<compile_context>
chip_gen: v7x
topology: tpu7x:2x2x1
jax: 0.10.0
libtpu: 0.0.40
codegen_flags: <defaults>
</compile_context>

<pallas_src>
import jax
import jax.numpy as jnp
from jax.experimental import pallas as pl
from jax.experimental.pallas import tpu as pltpu

_NEG_BIG = -1e30   # padded-class bias; exp(-1e30 - m) underflows to exactly 0 in f32
_LANE = 128


# ----------------------------------------------------------------------------
# One-time parameter prep (call once, cache the results; NOT per forward call)
# ----------------------------------------------------------------------------
def prepare_classifier_params(weight, bias):
    """Pad the class axis to a lane-dense multiple of 128 and pre-transpose.

    weight: [C, H] f32 (PyTorch nn.Linear layout)
    bias:   [C]    f32
    returns (w_t_pad [H, Cp] f32, b_pad [1, Cp] f32, C)
      - w_t_pad: zero-padded columns, already transposed so the kernel does the
        standard K-on-sublanes / N-on-lanes contraction (no per-step vxpose).
      - b_pad:   padded entries set to -1e30 so padded logits vanish in softmax.
    """
    C, H = weight.shape
    Cp = max(_LANE, ((C + _LANE - 1) // _LANE) * _LANE)
    w_t_pad = (jnp.zeros((H, Cp), dtype=jnp.float32)
               .at[:, :C].set(jnp.asarray(weight, jnp.float32).T))
    b_pad = (jnp.full((1, Cp), _NEG_BIG, dtype=jnp.float32)
             .at[0, :C].set(jnp.asarray(bias, jnp.float32)))
    return w_t_pad, b_pad, C


# ----------------------------------------------------------------------------
# Kernel
# ----------------------------------------------------------------------------
def _classifier_kernel(x_ref, w_ref, b_ref, o_ref):
    # x: [TB, H] (f32 or bf16), w: [H, Cp] f32, b: [1, Cp] f32 -> o: [TB, Cp] f32
    x = x_ref[...]
    # Linear layer: standard contraction, MXU matmul with f32 accumulation.
    logits = jnp.dot(x, w_ref[...], preferred_element_type=jnp.float32) + b_ref[...]
    # Numerically-stable softmax over the (padded) class axis; padded classes
    # have logit ~ -1e30 -> exp == 0, so they do not perturb max or denom.
    m = jnp.max(logits, axis=1, keepdims=True)
    e = jnp.exp(logits - m)
    denom = jnp.sum(e, axis=1, keepdims=True)
    o_ref[...] = (e / denom).astype(o_ref.dtype)


# ----------------------------------------------------------------------------
# Wrapper
# ----------------------------------------------------------------------------
def _grid_vmem_bytes(block_b, H, Cp, x_itemsize):
    # double-buffered x + double-buffered out + resident weight/bias
    return (2 * block_b * H * x_itemsize
            + 2 * block_b * Cp * 4
            + H * Cp * 4
            + Cp * 4)


def sentiment_classifier_padded(pooler_output, w_t_pad, b_pad, *, block_b=512):
    """Forward pass on pre-padded params. Returns lane-dense [B, Cp] probs."""
    B, H = pooler_output.shape
    Hw, Cp = w_t_pad.shape
    assert H == Hw, f"hidden-size mismatch: x has {H}, weight has {Hw}"

    if B <= block_b:
        # Small-batch path: no grid, no pipeline, whole arrays resident in VMEM.
        return pl.pallas_call(
            _classifier_kernel,
            out_shape=jax.ShapeDtypeStruct((B, Cp), jnp.float32),
            in_specs=[
                pl.BlockSpec(memory_space=pltpu.MemorySpace.VMEM),
                pl.BlockSpec(memory_space=pltpu.MemorySpace.VMEM),
                pl.BlockSpec(memory_space=pltpu.MemorySpace.VMEM),
            ],
            out_specs=pl.BlockSpec(memory_space=pltpu.MemorySpace.VMEM),
        )(pooler_output, w_t_pad, b_pad)

    # Batch-tiled path (B > block_b => grid has >= 2 steps, so the "parallel"
    # axis can actually shard across v7x's two TensorCores; harmless on
    # single-TC v5e/v6e).  Weight/bias blocks index (0, 0) on every step so
    # they stay resident in VMEM.
    needed = _grid_vmem_bytes(block_b, H, Cp, pooler_output.dtype.itemsize)
    vmem_limit = min(max(int(needed * 1.25) + (2 << 20), 16 << 20), 32 << 20)

    grid = (pl.cdiv(B, block_b),)
    return pl.pallas_call(
        _classifier_kernel,
        out_shape=jax.ShapeDtypeStruct((B, Cp), jnp.float32),
        grid=grid,
        in_specs=[
            pl.BlockSpec((block_b, H), lambda i: (i, 0)),
            pl.BlockSpec((H, Cp), lambda i: (0, 0)),
            pl.BlockSpec((1, Cp), lambda i: (0, 0)),
        ],
        out_specs=pl.BlockSpec((block_b, Cp), lambda i: (i, 0)),
        compiler_params=pltpu.CompilerParams(
            dimension_semantics=("parallel",),
            vmem_limit_bytes=vmem_limit,
        ),
    )(pooler_output, w_t_pad, b_pad)


def sentiment_classifier(pooler_output, w_t_pad, b_pad, n_classes, *,
                         block_b=512, return_padded=False):
    """SentimentClassifier forward (eval mode) on pre-prepared params.

    pooler_output: [B, H] f32 or bf16
    w_t_pad/b_pad: from prepare_classifier_params (built ONCE, cached)
    returns: [B, n_classes] softmax probs (or [B, Cp] padded if return_padded,
             letting a jitted consumer fuse / skip the slice).
    """
    probs_pad = sentiment_classifier_padded(pooler_output, w_t_pad, b_pad,
                                            block_b=block_b)
    if return_padded:
        return probs_pad
    return probs_pad[:, :n_classes]


def _reference(pooler_output, weight, bias):
    return jax.nn.softmax(pooler_output.astype(jnp.float32) @ weight.T + bias,
                          axis=1)


if __name__ == "__main__":
    H = 128   # pre_model_hidden_size
    C = 4     # n_classes

    key = jax.random.PRNGKey(0)
    kx, kw, kb, kx2 = jax.random.split(key, 4)

    # Deterministic parameter init (mimics nn.Linear's uniform(-1/sqrt(H), 1/sqrt(H))).
    bound = 1.0 / (H ** 0.5)
    weight = jax.random.uniform(kw, (C, H), minval=-bound, maxval=bound,
                                dtype=jnp.float32)
    bias = jax.random.uniform(kb, (C,), minval=-bound, maxval=bound,
                              dtype=jnp.float32)

    # One-time parameter prep (hoisted out of the per-call path).
    w_t_pad, b_pad, n_classes = prepare_classifier_params(weight, bias)
    w_t_pad = jax.block_until_ready(w_t_pad)
    b_pad = jax.block_until_ready(b_pad)

    # --- Small-batch (no-grid) path ---
    B = 8
    pooler_output = jax.random.normal(kx, (B, H), dtype=jnp.float32)
    probs = sentiment_classifier(pooler_output, w_t_pad, b_pad, n_classes)
    probs = jax.block_until_ready(probs)

    ref = _reference(pooler_output, weight, bias)
    assert probs.shape == (B, C)
    assert jnp.allclose(probs, ref, atol=1e-5, rtol=1e-5)
    assert jnp.allclose(jnp.sum(probs, axis=1), 1.0, atol=1e-5)

    # --- Batch-tiled (grid) path: small block_b here only to exercise a
    #     multi-step grid at test shapes; production default is block_b=512+. ---
    B2 = 256
    pooler_output2 = jax.random.normal(kx2, (B2, H), dtype=jnp.float32)
    probs2 = sentiment_classifier(pooler_output2, w_t_pad, b_pad, n_classes,
                                  block_b=128)
    probs2 = jax.block_until_ready(probs2)

    ref2 = _reference(pooler_output2, weight, bias)
    assert probs2.shape == (B2, C)
    assert jnp.allclose(probs2, ref2, atol=1e-5, rtol=1e-5)
    assert jnp.allclose(jnp.sum(probs2, axis=1), 1.0, atol=1e-5)

    print("KERNEL_OK")
</pallas_src>

<mosaic_0001>
module attributes {stable_mosaic.version = 11 : i64} {
  func.func @_classifier_kernel(%arg0: memref<8x128xf32, #tpu.memory_space<vmem>>, %arg1: memref<128x128xf32, #tpu.memory_space<vmem>>, %arg2: memref<1x128xf32, #tpu.memory_space<vmem>>, %arg3: memref<8x128xf32, #tpu.memory_space<vmem>>) attributes {dimension_semantics = [], scalar_prefetch = 0 : i64, scratch_operands = 0 : i64, tpu.core_type = #tpu.core_type<tc>} {
    %c0 = arith.constant 0 : index
    %c0_0 = arith.constant 0 : index
    %0 = vector.load %arg0[%c0, %c0_0] : memref<8x128xf32, #tpu.memory_space<vmem>>, vector<8x128xf32>
    %c0_1 = arith.constant 0 : index
    %c0_2 = arith.constant 0 : index
    %1 = vector.load %arg1[%c0_1, %c0_2] : memref<128x128xf32, #tpu.memory_space<vmem>>, vector<128x128xf32>
    %cst = arith.constant dense<0.000000e+00> : vector<8x128xf32>
    %2 = tpu.matmul %0, %1, %cst {dimension_numbers = #tpu.dot_dimension_numbers<[1], [0], [0], [1], [0, 0, 1, 1], [], []>} : vector<8x128xf32>, vector<128x128xf32>, vector<8x128xf32> -> vector<8x128xf32>
    %c0_3 = arith.constant 0 : index
    %c0_4 = arith.constant 0 : index
    %3 = vector.load %arg2[%c0_3, %c0_4] : memref<1x128xf32, #tpu.memory_space<vmem>>, vector<1x128xf32>
    %4 = vector.broadcast %3 : vector<1x128xf32> to vector<8x128xf32>
    %5 = arith.addf %2, %4 : vector<8x128xf32>
    %cst_5 = arith.constant dense<0xFF800000> : vector<8xf32>
    %6 = vector.multi_reduction <maximumf>, %5, %cst_5 [1] : vector<8x128xf32> to vector<8xf32>
    %7 = vector.shape_cast %6 : vector<8xf32> to vector<8x1xf32>
    %8 = vector.broadcast %7 : vector<8x1xf32> to vector<8x128xf32>
    %9 = arith.subf %5, %8 : vector<8x128xf32>
    %10 = math.exp %9 : vector<8x128xf32>
    %cst_6 = arith.constant dense<0.000000e+00> : vector<8xf32>
    %11 = vector.multi_reduction <add>, %10, %cst_6 [1] : vector<8x128xf32> to vector<8xf32>
    %12 = vector.shape_cast %11 : vector<8xf32> to vector<8x1xf32>
    %13 = vector.broadcast %12 : vector<8x1xf32> to vector<8x128xf32>
    %14 = arith.divf %10, %13 : vector<8x128xf32>
    %c0_7 = arith.constant 0 : index
    %c0_8 = arith.constant 0 : index
    %15 = vector.load %arg3[%c0_7, %c0_8] : memref<8x128xf32, #tpu.memory_space<vmem>>, vector<8x128xf32>
    tpu.vector_store %arg3[%c0_7, %c0_8], %14 {strides = array<i32>} : memref<8x128xf32, #tpu.memory_space<vmem>>, vector<8x128xf32>,
    return
  }
}

</mosaic_0001>

<llo_original>
// kernel: tpu_custom_call.1
$region0: #{tpu_custom_call.1}
  #allocation0 [shape = 'u32[]', space=smem, size = 0x4, offset = 0x4, fixed_abs, tag = 'smem constant byte address 0x4 - core index']
  #allocation1 [shape = 'u32[144,128]{1,0:T(1,128)}', space=vmem, size = 0x12000, scoped, tag = 'internal scratch']
  %s0 = inlined_call_operand.hbm [shape: f32[8,128], index: 0, kind: input, shape index: {}]
  %s1 = inlined_call_operand.hbm [shape: f32[128,128], index: 1, kind: input, shape index: {}]
  %s2 = inlined_call_operand.vmem [shape: f32[1,128], index: 2, kind: input, shape index: {}]
  %s3 = inlined_call_operand.hbm [shape: f32[8,128], index: 3, kind: output, shape index: {}]
  %s4 = sld [smem:[#allocation0]]
  $region30: #{tpu_custom_call.1} parent=0
    _
  %s6 = ssub.s32 1, %s4
  %s7 = scalar_select 0, %s6, %s4
  $region1: #{tpu_custom_call.1} parent=0
    #allocation2 [shape = 'u8[4096]{0}', space=vmem, size = 0x1000, scoped, tag = 'input window, operand 0, single buffered']
    #allocation3 [shape = 's32[1]{0}', space=sflag, size = 0x4, scoped, tag = 'scoped memory for tpu_custom_call.1']
    #allocation4 [shape = 's32[1]{0}', space=sflag, size = 0x4, scoped, tag = 'scoped memory for tpu_custom_call.1']
    #allocation5 [shape = 'u8[65536]{0}', space=vmem, size = 0x10000, scoped, tag = 'input window, operand 1, single buffered']
    #allocation6 [shape = 's32[1]{0}', space=sflag, size = 0x4, scoped, tag = 'scoped memory for tpu_custom_call.1']
    #allocation7 [shape = 'u8[4096]{0}', space=vmem, size = 0x1000, scoped, tag = 'output window, operand 0, single buffered']
    %8 = vsyncpa [#allocation3], 0
    %9 = vsyncpa [#allocation6], 0
    %10 = vsyncpa [#allocation4], 0
    // Predicated region
    $region2: #{tpu_custom_call.1} parent=1 // pred_check
      _
    $region3: #{tpu_custom_call.1} parent=1 // pred_check_branch
      %12 = sbr.rel (0) target = $region5
    $region4: #{tpu_custom_call.1} parent=1 // pred_region
      %s14 = ssub.s32 128, 128
      %15 = vsyncadd [#allocation3], %s14
      %s17 = sshll.u32 [#allocation2], 4
      %s18 = int_to_ptr.vmem [resolvable:$true] %s17
      %20 = dma.hbm_to_vmem [thread:$0]  %s0, 128, %s18, [#allocation3]
    $region5: #{tpu_custom_call.1} parent=1 // pred_fallthru
      _
    // Predicated region
    $region6: #{tpu_custom_call.1} parent=1 // pred_check
      _
    $region7: #{tpu_custom_call.1} parent=1 // pred_check_branch
      %22 = sbr.rel (0) target = $region9
    $region8: #{tpu_custom_call.1} parent=1 // pred_region
      %s24 = ssub.s32 2048, 2048
      %25 = vsyncadd [#allocation6], %s24
      %s26 = sshll.u32 [#allocation5], 4
      %s27 = int_to_ptr.vmem [resolvable:$true] %s26
      %32 = dma.hbm_to_vmem [thread:$0]  %s1, 2048, %s27, [#allocation6], 128, 128, 8
    $region9: #{tpu_custom_call.1} parent=1 // pred_fallthru
      _
    // Predicated region
    $region10: #{tpu_custom_call.1} parent=1 // pred_check
      _
    $region11: #{tpu_custom_call.1} parent=1 // pred_check_branch
      %34 = sbr.rel (0) target = $region13
    $region12: #{tpu_custom_call.1} parent=1 // pred_region
      _
    $region13: #{tpu_custom_call.1} parent=1 // pred_fallthru
      _
    // Predicated region
    $region14: #{tpu_custom_call.1} parent=1 // pred_check
      _
    $region15: #{tpu_custom_call.1} parent=1 // pred_check_branch
      %36 = sbr.rel (0) target = $region17
    $region16: #{tpu_custom_call.1} parent=1 // pred_region
      %37 = dma.done [#allocation3], 128
    $region17: #{tpu_custom_call.1} parent=1 // pred_fallthru
      _
    // Predicated region
    $region18: #{tpu_custom_call.1} parent=1 // pred_check
      _
    $region19: #{tpu_custom_call.1} parent=1 // pred_check_branch
      %39 = sbr.rel (0) target = $region21
    $region20: #{tpu_custom_call.1} parent=1 // pred_region
      %40 = dma.done [#allocation6], 2048
    $region21: #{tpu_custom_call.1} parent=1 // pred_fallthru
      _
    %v41 = vld [vmem:[#allocation2] sm:$0xff]
    %v42 = vld [vmem:[#allocation5] sm:$0xff]
    %v43 = vld [vmem:[#allocation5 + $0x8] sm:$0xff]
    %v44 = vld [vmem:[#allocation5 + $0x10] sm:$0xff]
    %v45 = vld [vmem:[#allocation5 + $0x18] sm:$0xff]
    %v46 = vld [vmem:[#allocation5 + $0x20] sm:$0xff]
    %v47 = vld [vmem:[#allocation5 + $0x28] sm:$0xff]
    %v48 = vld [vmem:[#allocation5 + $0x30] sm:$0xff]
    %v49 = vld [vmem:[#allocation5 + $0x38] sm:$0xff]
    %v50 = vld [vmem:[#allocation5 + $0x40] sm:$0xff]
    %v51 = vld [vmem:[#allocation5 + $0x48] sm:$0xff]
    %v52 = vld [vmem:[#allocation5 + $0x50] sm:$0xff]
    %v53 = vld [vmem:[#allocation5 + $0x58] sm:$0xff]
    %v54 = vld [vmem:[#allocation5 + $0x60] sm:$0xff]
    %v55 = vld [vmem:[#allocation5 + $0x68] sm:$0xff]
    %v56 = vld [vmem:[#allocation5 + $0x70] sm:$0xff]
    %v57 = vld [vmem:[#allocation5 + $0x78] sm:$0xff]
    %v58 = vld [vmem:[%s2] sm:$0x1]
    %v60 = vlaneseq
    %v61 = vshrl.u32 %v60, 7
    %v62 = vsub.s32 0, %v61
    %v63 = vrot.slane %v58, %v62
    %65 = vmatprep.subr.mxu0 0.0
    %66 = vmatpush1.msra.mxu0 %v42
    %67 = vmatprep.subr.mxu0 0.0
    %68 = vmatpush1.msra.mxu0 %v43
    %69 = vmatprep.subr.mxu0 0.0
    %70 = vmatpush1.msra.mxu0 %v44
    %71 = vmatprep.subr.mxu0 0.0
    %72 = vmatpush1.msra.mxu0 %v45
    %73 = vmatprep.subr.mxu0 0.0
    %74 = vmatpush1.msra.mxu0 %v46
    %75 = vmatprep.subr.mxu0 0.0
    %76 = vmatpush1.msra.mxu0 %v47
    %77 = vmatprep.subr.mxu0 0.0
    %78 = vmatpush1.msra.mxu0 %v48
    %79 = vmatprep.subr.mxu0 0.0
    %80 = vmatpush1.msra.mxu0 %v49
    %81 = vmatprep.subr.mxu0 0.0
    %82 = vmatpush1.msra.mxu0 %v50
    %83 = vmatprep.subr.mxu0 0.0
    %84 = vmatpush1.msra.mxu0 %v51
    %85 = vmatprep.subr.mxu0 0.0
    %86 = vmatpush1.msra.mxu0 %v52
    %87 = vmatprep.subr.mxu0 0.0
    %88 = vmatpush1.msra.mxu0 %v53
    %89 = vmatprep.subr.mxu0 0.0
    %90 = vmatpush1.msra.mxu0 %v54
    %91 = vmatprep.subr.mxu0 0.0
    %92 = vmatpush1.msra.mxu0 %v55
    %93 = vmatprep.subr.mxu0 0.0
    %94 = vmatpush1.msra.mxu0 %v56
    %95 = vmatprep.subr.mxu0 0.0
    %96 = vmatpush1.msra.mxu0 %v57
    %97 = vmatprep.subr.mxu0 0.0
    %98 = vmatpush1.msra.mxu0 0.0
    %99 = vmatprep.subr.mxu0 0.0
    %100 = vmatpush1.msra.mxu0 0.0
    %101 = vmatprep.subr.mxu0 0.0
    %102 = vmatpush1.msra.mxu0 0.0
    %103 = vmatprep.subr.mxu0 0.0
    %104 = vmatpush1.msra.mxu0 0.0
    %105 = vmatprep.subr.mxu0 0.0
    %106 = vmatpush1.msra.mxu0 0.0
    %107 = vmatprep.subr.mxu0 0.0
    %108 = vmatpush1.msra.mxu0 0.0
    %109 = vmatprep.subr.mxu0 0.0
    %110 = vmatpush1.msra.mxu0 0.0
    %111 = vmatprep.subr.mxu0 0.0
    %112 = vmatpush1.msra.mxu0 0.0
    %113 = vmatprep.subr.mxu0 0.0
    %114 = vmatpush1.msra.mxu0 0.0
    %115 = vmatprep.subr.mxu0 0.0
    %116 = vmatpush1.msra.mxu0 0.0
    %117 = vmatprep.subr.mxu0 0.0
    %118 = vmatpush1.msra.mxu0 0.0
    %119 = vmatprep.subr.mxu0 0.0
    %120 = vmatpush1.msra.mxu0 0.0
    %121 = vmatprep.subr.mxu0 0.0
    %122 = vmatpush1.msra.mxu0 0.0
    %123 = vmatprep.subr.mxu0 0.0
    %124 = vmatpush1.msra.mxu0 0.0
    %125 = vmatprep.subr.mxu0 0.0
    %126 = vmatpush1.msra.mxu0 0.0
    %127 = vmatprep.subr.mxu0 0.0
    %128 = vmatpush1.msra.mxu0 0.0
    %129 = vmatprep.mubr.f32.mxu0 0.0
    %130 = vmatmul.mubr.f32.gmra.mrb[0].mxu0 %v41
    %v131 = vpop.f32.mrb[0].mxu0
    %v132 = vadd.f32 %v63, %v131
    %v133 = vpop.f32.mrb[0].mxu0
    %134 = vdwg.mxu0
    %135 = vmax.xlane.f32.xlu0 %v132
    %v136 = vpop.xlane.xlu0 %135
    %v137 = vsub.f32 %v132, %v136
    %v138 = vmul.f32 %v137, 1.442695
    %v139 = vpow.pop %v138
    %140 = vadd.xlane.f32.xlu0 %v139
    %v141 = vpop.xlane.xlu0 %140
    %v142 = vrcp.pop %v141
    %v143 = vmul.f32 %v139, %v142
    %144 = vst [vmem:[#allocation7] sm:$0xff] %v143
    // Predicated region
    $region22: #{tpu_custom_call.1} parent=1 // pred_check
      _
    $region23: #{tpu_custom_call.1} parent=1 // pred_check_branch
      %146 = sbr.rel (0) target = $region25
    $region24: #{tpu_custom_call.1} parent=1 // pred_region
      %s148 = ssub.s32 128, 128
      %149 = vsyncadd [#allocation4], %s148
      %s151 = sshll.u32 [#allocation7], 4
      %s152 = int_to_ptr.vmem [resolvable:$true] %s151
      %154 = dma.vmem_to_hbm [thread:$0]  %s152, 128, %s3, [#allocation4]
    $region25: #{tpu_custom_call.1} parent=1 // pred_fallthru
      _
    // Predicated region
    $region26: #{tpu_custom_call.1} parent=1 // pred_check
      _
    $region27: #{tpu_custom_call.1} parent=1 // pred_check_branch
      %156 = sbr.rel (0) target = $region29
    $region28: #{tpu_custom_call.1} parent=1 // pred_region
      %157 = dma.done [#allocation4], 128
    $region29: #{tpu_custom_call.1} parent=1 // pred_fallthru
      _
    %158 = vsyncpa [#allocation3], 1
    %159 = vsyncpa [#allocation6], 1
    %160 = vsyncpa [#allocation4], 1

</llo_original>
